<compile_context>
chip_gen: v7x
topology: tpu7x:2x2x1
jax: 0.10.0
libtpu: 0.0.40
codegen_flags: <defaults>
</compile_context>

<pallas_src>
import functools

import jax
import jax.numpy as jnp
from jax.experimental import pallas as pl
from jax.experimental.pallas import tpu as pltpu

MAP_SIZE = 15
INPUT_DIM = MAP_SIZE * MAP_SIZE * 3 + 2   # 677
HIDDEN_DIM = 28
GWS_DIM = 8
OUTPUT_DIM = 4
VALUE_DIM = 1

# Padded (TPU-friendly) dims.
INP_P = 768        # 677 -> multiple of 128 (lane/contraction dim of encoder)
HID_P = 32         # 28  -> multiple of 8 (also lane width of encoder output)

# Per-agent lane-block widths in the block-diagonal packing.
BLK_A = 32         # attention hidden (28) / GWS (8) block
BLK_H = 64         # fused actor+critic hidden block (28 + 28 = 56)
BLK_O = 32         # fused output block (4 actions + 1 value = 5)

# Shared-encoder tail slab rows ([ENC_REST_ROWS, HID_P]).
ENC_B1_ROW = 0
ENC_W2_ROW = 8       # 28 real rows (loaded as 32)
ENC_B2_ROW = 40
ENC_REST_ROWS = 48


def _round_up(x, m):
    return ((x + m - 1) // m) * m


# ---------------------------------------------------------------------------
# kernel (single invocation, everything resident in VMEM)
# ---------------------------------------------------------------------------
def _forward_kernel(state_ref, enc_w1_ref, enc_rest_ref,
                    att1_ref, att2_ref, head1_ref, head2_ref,
                    out_ref, xpad_ref, *, rows):
    nw1 = att1_ref.shape[1]          # n_agents * BLK_A
    nh = head1_ref.shape[1]          # n_agents * BLK_H

    # ---- pad raw state into an (8,128)-aligned VMEM scratch ------------------
    xpad_ref[...] = jnp.zeros_like(xpad_ref)          # zero lane/row padding
    xpad_ref[0:rows, 0:INPUT_DIM] = state_ref[...]    # masked partial store
    x = xpad_ref[...]                                 # [ROWS_P, INP_P]

    # ---- shared encoder over all agents' rows at once ------------------------
    w1 = enc_w1_ref[...]                                      # [INP_P, HID_P]
    b1 = enc_rest_ref[ENC_B1_ROW:ENC_B1_ROW + 1, :]           # [1, HID_P]
    w2 = enc_rest_ref[ENC_W2_ROW:ENC_W2_ROW + HID_P, :]       # [HID_P, HID_P]
    b2 = enc_rest_ref[ENC_B2_ROW:ENC_B2_ROW + 1, :]           # [1, HID_P]

    h = jnp.maximum(jnp.dot(x, w1, preferred_element_type=jnp.float32) + b1, 0.0)
    enc = jnp.dot(h, w2, preferred_element_type=jnp.float32) + b2   # [ROWS_P, HID_P]

    # ---- attention + fused actor/critic head: 4 block-diagonal matmuls -------
    aw1 = att1_ref[0:HID_P, :]                    # [32, N*32]  (concat per agent)
    ab1 = att1_ref[HID_P:HID_P + 1, :]            # [1,  N*32]
    h1 = jnp.maximum(
        jnp.dot(enc, aw1, preferred_element_type=jnp.float32) + ab1, 0.0)

    aw2 = att2_ref[0:nw1, :]                      # [N*32, N*32] block-diag
    ab2 = att2_ref[nw1:nw1 + 1, :]
    g = jnp.dot(h1, aw2, preferred_element_type=jnp.float32) + ab2

    hw1 = head1_ref[0:nw1, :]                     # [N*32, N*64] block-diag
    hb1 = head1_ref[nw1:nw1 + 1, :]
    h2 = jnp.maximum(
        jnp.dot(g, hw1, preferred_element_type=jnp.float32) + hb1, 0.0)

    hw2 = head2_ref[0:nh, :]                      # [N*64, OUT_LANES] block-diag
    hb2 = head2_ref[nh:nh + 1, :]
    out_ref[...] = jnp.dot(h2, hw2, preferred_element_type=jnp.float32) + hb2


# ---------------------------------------------------------------------------
# parameter construction (deterministic, PyTorch-Linear-like init)
# ---------------------------------------------------------------------------
def _linear_params(key, fan_in, fan_out):
    """Weights stored as [in, out] (so x @ W).  U(-1/sqrt(in), 1/sqrt(in))."""
    kw, kb = jax.random.split(key)
    bound = 1.0 / jnp.sqrt(jnp.float32(fan_in))
    w = jax.random.uniform(kw, (fan_in, fan_out), jnp.float32, -bound, bound)
    b = jax.random.uniform(kb, (fan_out,), jnp.float32, -bound, bound)
    return w, b


def make_params(key, n_agents):
    """Raw (unpadded) module parameters."""
    keys = jax.random.split(key, 2 + 6 * n_agents)
    ki = iter(keys)
    enc = (*_linear_params(next(ki), INPUT_DIM, HIDDEN_DIM),
           *_linear_params(next(ki), HIDDEN_DIM, HIDDEN_DIM))
    att = [(*_linear_params(next(ki), HIDDEN_DIM, HIDDEN_DIM),
            *_linear_params(next(ki), HIDDEN_DIM, GWS_DIM))
           for _ in range(n_agents)]
    act = [(*_linear_params(next(ki), GWS_DIM, HIDDEN_DIM),
            *_linear_params(next(ki), HIDDEN_DIM, OUTPUT_DIM))
           for _ in range(n_agents)]
    cri = [(*_linear_params(next(ki), GWS_DIM, HIDDEN_DIM),
            *_linear_params(next(ki), HIDDEN_DIM, VALUE_DIM))
           for _ in range(n_agents)]
    return {"enc": enc, "att": att, "act": act, "cri": cri}


def pack_params(raw, n_agents):
    """Pack raw params into lane-wide block-diagonal slabs (f32).

    Each slab has its bias in one extra row right below the weight rows, so the
    kernel needs only 6 small parameter DMAs in total.
    """
    ew1, eb1, ew2, eb2 = raw["enc"]

    enc_w1 = jnp.zeros((INP_P, HID_P), jnp.float32)
    enc_w1 = enc_w1.at[:INPUT_DIM, :HIDDEN_DIM].set(ew1)

    enc_rest = jnp.zeros((ENC_REST_ROWS, HID_P), jnp.float32)
    enc_rest = enc_rest.at[ENC_B1_ROW, :HIDDEN_DIM].set(eb1)
    enc_rest = enc_rest.at[ENC_W2_ROW:ENC_W2_ROW + HIDDEN_DIM, :HIDDEN_DIM].set(ew2)
    enc_rest = enc_rest.at[ENC_B2_ROW, :HIDDEN_DIM].set(eb2)

    nw1 = n_agents * BLK_A
    nh = n_agents * BLK_H
    out_lanes = _round_up(n_agents * BLK_O, 128)   # lane-dense output

    att1 = jnp.zeros((HID_P + 8, nw1), jnp.float32)     # concat along lanes
    att2 = jnp.zeros((nw1 + 8, nw1), jnp.float32)       # block-diagonal
    head1 = jnp.zeros((nw1 + 8, nh), jnp.float32)       # block-diagonal
    head2 = jnp.zeros((nh + 8, out_lanes), jnp.float32)  # block-diagonal

    for i in range(n_agents):
        aw1, ab1, aw2, ab2 = raw["att"][i]
        acw1, acb1, acw2, acb2 = raw["act"][i]
        crw1, crb1, crw2, crb2 = raw["cri"][i]

        ca = i * BLK_A
        ch = i * BLK_H
        co = i * BLK_O

        # attention fc1 (shared 28-lane input -> agent i's 28-lane block)
        att1 = att1.at[0:HIDDEN_DIM, ca:ca + HIDDEN_DIM].set(aw1)
        att1 = att1.at[HID_P, ca:ca + HIDDEN_DIM].set(ab1)

        # attention fc2 (block-diag): agent i block -> GWS (8) in its block
        att2 = att2.at[ca:ca + HIDDEN_DIM, ca:ca + GWS_DIM].set(aw2)
        att2 = att2.at[nw1, ca:ca + GWS_DIM].set(ab2)

        # fused actor/critic fc1: GWS block -> [actor_hidden || critic_hidden]
        head1 = head1.at[ca:ca + GWS_DIM, ch:ch + HIDDEN_DIM].set(acw1)
        head1 = head1.at[ca:ca + GWS_DIM, ch + HIDDEN_DIM:ch + 2 * HIDDEN_DIM].set(crw1)
        head1 = head1.at[nw1, ch:ch + HIDDEN_DIM].set(acb1)
        head1 = head1.at[nw1, ch + HIDDEN_DIM:ch + 2 * HIDDEN_DIM].set(crb1)

        # fused actor/critic fc2: actions -> lanes co..co+3, value -> lane co+4
        head2 = head2.at[ch:ch + HIDDEN_DIM, co:co + OUTPUT_DIM].set(acw2)
        head2 = head2.at[ch + HIDDEN_DIM:ch + 2 * HIDDEN_DIM,
                         co + OUTPUT_DIM:co + OUTPUT_DIM + VALUE_DIM].set(crw2)
        head2 = head2.at[nh, co:co + OUTPUT_DIM].set(acb2)
        head2 = head2.at[nh, co + OUTPUT_DIM].set(crb2[0])

    return {"enc_w1": enc_w1, "enc_rest": enc_rest,
            "att1": att1, "att2": att2, "head1": head1, "head2": head2}


# ---------------------------------------------------------------------------
# wrapper
# ---------------------------------------------------------------------------
def actor_critic_forward(state, packed):
    """state: [N_agents, B, INPUT_DIM] float32.
    Returns (actions_pred [N,B,4], value_pred [N,B,1], extra_loss 0.0)."""
    n_agents, batch, in_dim = state.shape
    assert in_dim == INPUT_DIM
    assert packed["att1"].shape[1] == n_agents * BLK_A

    rows = n_agents * batch
    rows_p = _round_up(rows, 8)
    nw1 = n_agents * BLK_A
    nh = n_agents * BLK_H
    out_lanes = packed["head2"].shape[1]

    # Cheap metadata reshape only — padding happens inside the kernel.
    state2d = state.reshape(rows, INPUT_DIM).astype(jnp.float32)

    flops = (2 * rows_p * (INP_P * HID_P + HID_P * HID_P)
             + 2 * rows_p * (HID_P * nw1 + nw1 * nw1 + nw1 * nh + nh * out_lanes))
    bytes_accessed = 4 * (state2d.size
                          + packed["enc_w1"].size + packed["enc_rest"].size
                          + packed["att1"].size + packed["att2"].size
                          + packed["head1"].size + packed["head2"].size
                          + rows_p * out_lanes)

    out = pl.pallas_call(
        functools.partial(_forward_kernel, rows=rows),
        out_shape=jax.ShapeDtypeStruct((rows_p, out_lanes), jnp.float32),
        scratch_shapes=[pltpu.VMEM((rows_p, INP_P), jnp.float32)],
        cost_estimate=pl.CostEstimate(flops=flops, transcendentals=0,
                                      bytes_accessed=bytes_accessed),
        # TODO(synk): for large n_agents on v7x, switch to an agent-group grid
        # with dimension_semantics=("parallel",) and set vmem_limit_bytes.
    )(state2d, packed["enc_w1"], packed["enc_rest"],
      packed["att1"], packed["att2"], packed["head1"], packed["head2"])

    # Gather each agent's diagonal lane block: actions lanes i*32..i*32+3,
    # value lane i*32+4 of that agent's rows.
    out_r = out[:rows].reshape(n_agents, batch, out_lanes)
    sel_idx = (jnp.arange(n_agents)[:, None, None] * BLK_O
               + jnp.arange(OUTPUT_DIM + VALUE_DIM)[None, None, :])   # [N,1,5]
    sel = jnp.take_along_axis(out_r, sel_idx, axis=2)                 # [N,B,5]

    actions_pred = sel[..., :OUTPUT_DIM]
    value_pred = sel[..., OUTPUT_DIM:OUTPUT_DIM + VALUE_DIM]
    extra_loss = jnp.float32(0.0)   # hypothesis == 1
    return actions_pred, value_pred, extra_loss


# ---------------------------------------------------------------------------
# pure-JAX reference (for correctness check)
# ---------------------------------------------------------------------------
def _ref_forward(state, raw):
    def mlp(x, w1, b1, w2, b2):
        return jnp.maximum(x @ w1 + b1, 0.0) @ w2 + b2

    enc = mlp(state, *raw["enc"])                 # [N, B, 28]
    acts, vals = [], []
    for i in range(len(raw["att"])):
        gws = mlp(enc[i], *raw["att"][i])
        acts.append(mlp(gws, *raw["act"][i]))
        vals.append(mlp(gws, *raw["cri"][i]))
    return jnp.stack(acts, 0), jnp.stack(vals, 0)


if __name__ == "__main__":
    key = jax.random.PRNGKey(0)
    k_param, k_state = jax.random.split(key)

    N_AGENTS = 3
    BATCH = 2

    raw = make_params(k_param, N_AGENTS)
    packed = pack_params(raw, N_AGENTS)
    state = jax.random.normal(k_state, (N_AGENTS, BATCH, INPUT_DIM), jnp.float32)

    actions_pred, value_pred, extra_loss = actor_critic_forward(state, packed)
    actions_pred = jax.block_until_ready(actions_pred)
    value_pred = jax.block_until_ready(value_pred)

    assert actions_pred.shape == (N_AGENTS, BATCH, OUTPUT_DIM)
    assert value_pred.shape == (N_AGENTS, BATCH, VALUE_DIM)

    ref_a, ref_v = _ref_forward(state, raw)
    assert jnp.allclose(actions_pred, ref_a, atol=1e-4, rtol=1e-4)
    assert jnp.allclose(value_pred, ref_v, atol=1e-4, rtol=1e-4)

    print("KERNEL_OK")
</pallas_src>

<mosaic_0001>
module attributes {stable_mosaic.version = 11 : i64} {
  func.func @_forward_kernel(%arg0: memref<6x677xf32, #tpu.memory_space<vmem>>, %arg1: memref<768x32xf32, #tpu.memory_space<vmem>>, %arg2: memref<48x32xf32, #tpu.memory_space<vmem>>, %arg3: memref<40x96xf32, #tpu.memory_space<vmem>>, %arg4: memref<104x96xf32, #tpu.memory_space<vmem>>, %arg5: memref<104x192xf32, #tpu.memory_space<vmem>>, %arg6: memref<200x128xf32, #tpu.memory_space<vmem>>, %arg7: memref<8x128xf32, #tpu.memory_space<vmem>>, %arg8: memref<8x768xf32, #tpu.memory_space<vmem>>) attributes {dimension_semantics = [], scalar_prefetch = 0 : i64, scratch_operands = 1 : i64, tpu.core_type = #tpu.core_type<tc>} {
    %cst = arith.constant 0.000000e+00 : f32
    %0 = vector.broadcast %cst : f32 to vector<8x768xf32>
    %c0 = arith.constant 0 : index
    %c0_0 = arith.constant 0 : index
    %1 = vector.load %arg8[%c0, %c0_0] : memref<8x768xf32, #tpu.memory_space<vmem>>, vector<8x768xf32>
    tpu.vector_store %arg8[%c0, %c0_0], %0 {strides = array<i32>} : memref<8x768xf32, #tpu.memory_space<vmem>>, vector<8x768xf32>,
    %c0_1 = arith.constant 0 : index
    %c0_2 = arith.constant 0 : index
    %2 = vector.load %arg0[%c0_1, %c0_2] : memref<6x677xf32, #tpu.memory_space<vmem>>, vector<6x677xf32>
    %c0_3 = arith.constant 0 : index
    %c0_4 = arith.constant 0 : index
    %3 = vector.load %arg8[%c0_3, %c0_4] : memref<8x768xf32, #tpu.memory_space<vmem>>, vector<6x677xf32>
    tpu.vector_store %arg8[%c0_3, %c0_4], %2 {strides = array<i32>} : memref<8x768xf32, #tpu.memory_space<vmem>>, vector<6x677xf32>,
    %c0_5 = arith.constant 0 : index
    %c0_6 = arith.constant 0 : index
    %4 = vector.load %arg8[%c0_5, %c0_6] : memref<8x768xf32, #tpu.memory_space<vmem>>, vector<8x768xf32>
    %c0_7 = arith.constant 0 : index
    %c0_8 = arith.constant 0 : index
    %5 = vector.load %arg1[%c0_7, %c0_8] : memref<768x32xf32, #tpu.memory_space<vmem>>, vector<768x32xf32>
    %c0_9 = arith.constant 0 : index
    %c0_10 = arith.constant 0 : index
    %6 = vector.load %arg2[%c0_9, %c0_10] : memref<48x32xf32, #tpu.memory_space<vmem>>, vector<1x32xf32>
    %c8 = arith.constant 8 : index
    %c0_11 = arith.constant 0 : index
    %7 = vector.load %arg2[%c8, %c0_11] : memref<48x32xf32, #tpu.memory_space<vmem>>, vector<32x32xf32>
    %c40 = arith.constant 40 : index
    %c0_12 = arith.constant 0 : index
    %8 = vector.load %arg2[%c40, %c0_12] : memref<48x32xf32, #tpu.memory_space<vmem>>, vector<1x32xf32>
    %cst_13 = arith.constant dense<0.000000e+00> : vector<8x32xf32>
    %9 = tpu.matmul %4, %5, %cst_13 {dimension_numbers = #tpu.dot_dimension_numbers<[1], [0], [0], [1], [0, 0, 1, 1], [], []>} : vector<8x768xf32>, vector<768x32xf32>, vector<8x32xf32> -> vector<8x32xf32>
    %10 = vector.broadcast %6 : vector<1x32xf32> to vector<8x32xf32>
    %11 = arith.addf %9, %10 : vector<8x32xf32>
    %cst_14 = arith.constant 0.000000e+00 : f32
    %12 = vector.broadcast %cst_14 : f32 to vector<8x32xf32>
    %13 = arith.maximumf %11, %12 : vector<8x32xf32>
    %cst_15 = arith.constant dense<0.000000e+00> : vector<8x32xf32>
    %14 = tpu.matmul %13, %7, %cst_15 {dimension_numbers = #tpu.dot_dimension_numbers<[1], [0], [0], [1], [0, 0, 1, 1], [], []>} : vector<8x32xf32>, vector<32x32xf32>, vector<8x32xf32> -> vector<8x32xf32>
    %15 = vector.broadcast %8 : vector<1x32xf32> to vector<8x32xf32>
    %16 = arith.addf %14, %15 : vector<8x32xf32>
    %c0_16 = arith.constant 0 : index
    %c0_17 = arith.constant 0 : index
    %17 = vector.load %arg3[%c0_16, %c0_17] : memref<40x96xf32, #tpu.memory_space<vmem>>, vector<32x96xf32>
    %c32 = arith.constant 32 : index
    %c0_18 = arith.constant 0 : index
    %18 = vector.load %arg3[%c32, %c0_18] : memref<40x96xf32, #tpu.memory_space<vmem>>, vector<1x96xf32>
    %cst_19 = arith.constant dense<0.000000e+00> : vector<8x96xf32>
    %19 = tpu.matmul %16, %17, %cst_19 {dimension_numbers = #tpu.dot_dimension_numbers<[1], [0], [0], [1], [0, 0, 1, 1], [], []>} : vector<8x32xf32>, vector<32x96xf32>, vector<8x96xf32> -> vector<8x96xf32>
    %20 = vector.broadcast %18 : vector<1x96xf32> to vector<8x96xf32>
    %21 = arith.addf %19, %20 : vector<8x96xf32>
    %cst_20 = arith.constant 0.000000e+00 : f32
    %22 = vector.broadcast %cst_20 : f32 to vector<8x96xf32>
    %23 = arith.maximumf %21, %22 : vector<8x96xf32>
    %c0_21 = arith.constant 0 : index
    %c0_22 = arith.constant 0 : index
    %24 = vector.load %arg4[%c0_21, %c0_22] : memref<104x96xf32, #tpu.memory_space<vmem>>, vector<96x96xf32>
    %c96 = arith.constant 96 : index
    %c0_23 = arith.constant 0 : index
    %25 = vector.load %arg4[%c96, %c0_23] : memref<104x96xf32, #tpu.memory_space<vmem>>, vector<1x96xf32>
    %cst_24 = arith.constant dense<0.000000e+00> : vector<8x96xf32>
    %26 = tpu.matmul %23, %24, %cst_24 {dimension_numbers = #tpu.dot_dimension_numbers<[1], [0], [0], [1], [0, 0, 1, 1], [], []>} : vector<8x96xf32>, vector<96x96xf32>, vector<8x96xf32> -> vector<8x96xf32>
    %27 = vector.broadcast %25 : vector<1x96xf32> to vector<8x96xf32>
    %28 = arith.addf %26, %27 : vector<8x96xf32>
    %c0_25 = arith.constant 0 : index
    %c0_26 = arith.constant 0 : index
    %29 = vector.load %arg5[%c0_25, %c0_26] : memref<104x192xf32, #tpu.memory_space<vmem>>, vector<96x192xf32>
    %c96_27 = arith.constant 96 : index
    %c0_28 = arith.constant 0 : index
    %30 = vector.load %arg5[%c96_27, %c0_28] : memref<104x192xf32, #tpu.memory_space<vmem>>, vector<1x192xf32>
    %cst_29 = arith.constant dense<0.000000e+00> : vector<8x192xf32>
    %31 = tpu.matmul %28, %29, %cst_29 {dimension_numbers = #tpu.dot_dimension_numbers<[1], [0], [0], [1], [0, 0, 1, 1], [], []>} : vector<8x96xf32>, vector<96x192xf32>, vector<8x192xf32> -> vector<8x192xf32>
    %32 = vector.broadcast %30 : vector<1x192xf32> to vector<8x192xf32>
    %33 = arith.addf %31, %32 : vector<8x192xf32>
    %cst_30 = arith.constant 0.000000e+00 : f32
    %34 = vector.broadcast %cst_30 : f32 to vector<8x192xf32>
    %35 = arith.maximumf %33, %34 : vector<8x192xf32>
    %c0_31 = arith.constant 0 : index
    %c0_32 = arith.constant 0 : index
    %36 = vector.load %arg6[%c0_31, %c0_32] : memref<200x128xf32, #tpu.memory_space<vmem>>, vector<192x128xf32>
    %c192 = arith.constant 192 : index
    %c0_33 = arith.constant 0 : index
    %37 = vector.load %arg6[%c192, %c0_33] : memref<200x128xf32, #tpu.memory_space<vmem>>, vector<1x128xf32>
    %cst_34 = arith.constant dense<0.000000e+00> : vector<8x128xf32>
    %38 = tpu.matmul %35, %36, %cst_34 {dimension_numbers = #tpu.dot_dimension_numbers<[1], [0], [0], [1], [0, 0, 1, 1], [], []>} : vector<8x192xf32>, vector<192x128xf32>, vector<8x128xf32> -> vector<8x128xf32>
    %39 = vector.broadcast %37 : vector<1x128xf32> to vector<8x128xf32>
    %40 = arith.addf %38, %39 : vector<8x128xf32>
    %c0_35 = arith.constant 0 : index
    %c0_36 = arith.constant 0 : index
    %41 = vector.load %arg7[%c0_35, %c0_36] : memref<8x128xf32, #tpu.memory_space<vmem>>, vector<8x128xf32>
    tpu.vector_store %arg7[%c0_35, %c0_36], %40 {strides = array<i32>} : memref<8x128xf32, #tpu.memory_space<vmem>>, vector<8x128xf32>,
    return
  }
}

</mosaic_0001>

<llo_original>
// kernel: tpu_custom_call.1
$region0: #{tpu_custom_call.1}
  #allocation0 [shape = 'u32[]', space=smem, size = 0x4, offset = 0x4, fixed_abs, tag = 'smem constant byte address 0x4 - core index']
  #allocation1 [shape = 'u32[144,128]{1,0:T(1,128)}', space=vmem, size = 0x12000, scoped, tag = 'internal scratch']
  #allocation2 [shape = 'f32[8,768]{1,0:T(8,128)}', space=vmem, size = 0x6000, scoped, tag = 'scratch operand']
  %s0 = inlined_call_operand.vmem [shape: f32[6,677], index: 0, kind: input, shape index: {}]
  %s1 = inlined_call_operand.vmem [shape: f32[768,32], index: 1, kind: input, shape index: {}]
  %s2 = inlined_call_operand.vmem [shape: f32[48,32], index: 2, kind: input, shape index: {}]
  %s3 = inlined_call_operand.vmem [shape: f32[40,96], index: 3, kind: input, shape index: {}]
  %s4 = inlined_call_operand.vmem [shape: f32[104,96], index: 4, kind: input, shape index: {}]
  %s5 = inlined_call_operand.vmem [shape: f32[104,192], index: 5, kind: input, shape index: {}]
  %s6 = inlined_call_operand.vmem [shape: f32[200,128], index: 6, kind: input, shape index: {}]
  %s7 = inlined_call_operand.hbm [shape: f32[8,128], index: 7, kind: output, shape index: {}]
  %s8 = sld [smem:[#allocation0]]
  $region38: #{tpu_custom_call.1} parent=0
    _
  %s10 = ssub.s32 1, %s8
  %s11 = scalar_select 0, %s10, %s8
  $region1: #{tpu_custom_call.1} parent=0
    #allocation3 [shape = 'u8[4096]{0}', space=vmem, size = 0x1000, scoped, tag = 'output window, operand 0, single buffered']
    #allocation4 [shape = 's32[1]{0}', space=sflag, size = 0x4, scoped, tag = 'scoped memory for tpu_custom_call.1']
    %12 = vsyncpa [#allocation4], 0
    // Predicated region
    $region2: #{tpu_custom_call.1} parent=1 // pred_check
      _
    $region3: #{tpu_custom_call.1} parent=1 // pred_check_branch
      %14 = sbr.rel (0) target = $region5
    $region4: #{tpu_custom_call.1} parent=1 // pred_region
      _
    $region5: #{tpu_custom_call.1} parent=1 // pred_fallthru
      _
    // Predicated region
    $region6: #{tpu_custom_call.1} parent=1 // pred_check
      _
    $region7: #{tpu_custom_call.1} parent=1 // pred_check_branch
      %16 = sbr.rel (0) target = $region9
    $region8: #{tpu_custom_call.1} parent=1 // pred_region
      _
    $region9: #{tpu_custom_call.1} parent=1 // pred_fallthru
      _
    // Predicated region
    $region10: #{tpu_custom_call.1} parent=1 // pred_check
      _
    $region11: #{tpu_custom_call.1} parent=1 // pred_check_branch
      %18 = sbr.rel (0) target = $region13
    $region12: #{tpu_custom_call.1} parent=1 // pred_region
      _
    $region13: #{tpu_custom_call.1} parent=1 // pred_fallthru
      _
    // Predicated region
    $region14: #{tpu_custom_call.1} parent=1 // pred_check
      _
    $region15: #{tpu_custom_call.1} parent=1 // pred_check_branch
      %20 = sbr.rel (0) target = $region17
    $region16: #{tpu_custom_call.1} parent=1 // pred_region
      _
    $region17: #{tpu_custom_call.1} parent=1 // pred_fallthru
      _
    // Predicated region
    $region18: #{tpu_custom_call.1} parent=1 // pred_check
      _
    $region19: #{tpu_custom_call.1} parent=1 // pred_check_branch
      %22 = sbr.rel (0) target = $region21
    $region20: #{tpu_custom_call.1} parent=1 // pred_region
      _
    $region21: #{tpu_custom_call.1} parent=1 // pred_fallthru
      _
    // Predicated region
    $region22: #{tpu_custom_call.1} parent=1 // pred_check
      _
    $region23: #{tpu_custom_call.1} parent=1 // pred_check_branch
      %24 = sbr.rel (0) target = $region25
    $region24: #{tpu_custom_call.1} parent=1 // pred_region
      _
    $region25: #{tpu_custom_call.1} parent=1 // pred_fallthru
      _
    // Predicated region
    $region26: #{tpu_custom_call.1} parent=1 // pred_check
      _
    $region27: #{tpu_custom_call.1} parent=1 // pred_check_branch
      %26 = sbr.rel (0) target = $region29
    $region28: #{tpu_custom_call.1} parent=1 // pred_region
      _
    $region29: #{tpu_custom_call.1} parent=1 // pred_fallthru
      _
    %27 = vst [vmem:[#allocation2] sm:$0xff] 0.0
    %28 = vst [vmem:[#allocation2 + $0x8] sm:$0xff] 0.0
    %29 = vst [vmem:[#allocation2 + $0x10] sm:$0xff] 0.0
    %30 = vst [vmem:[#allocation2 + $0x18] sm:$0xff] 0.0
    %31 = vst [vmem:[#allocation2 + $0x20] sm:$0xff] 0.0
    %32 = vst [vmem:[#allocation2 + $0x28] sm:$0xff] 0.0
    %v33 = vld [vmem:[%s0] sm:$0x3f]
    %v34 = vld [vmem:[%s0 + $0x8] sm:$0x3f]
    %v35 = vld [vmem:[%s0 + $0x10] sm:$0x3f]
    %v36 = vld [vmem:[%s0 + $0x18] sm:$0x3f]
    %v37 = vld [vmem:[%s0 + $0x20] sm:$0x3f]
    %v38 = vld [vmem:[%s0 + $0x28] sm:$0x3f]
    %39 = vst [vmem:[#allocation2] sm:$0x3f] %v33
    %40 = vst [vmem:[#allocation2 + $0x8] sm:$0x3f] %v34
    %41 = vst [vmem:[#allocation2 + $0x10] sm:$0x3f] %v35
    %42 = vst [vmem:[#allocation2 + $0x18] sm:$0x3f] %v36
    %43 = vst [vmem:[#allocation2 + $0x20] sm:$0x3f] %v37
    %vm44 = vcmask 300032
    %45 = vst.msk [vmem:[#allocation2 + $0x28] sm:$0x3f] %vm44, %v38
    %v46 = vld [vmem:[#allocation2] sm:$0xff]
    %v47 = vld [vmem:[#allocation2 + $0x8] sm:$0xff]
    %v48 = vld [vmem:[#allocation2 + $0x10] sm:$0xff]
    %v49 = vld [vmem:[#allocation2 + $0x18] sm:$0xff]
    %v50 = vld [vmem:[#allocation2 + $0x20] sm:$0xff]
    %v51 = vld [vmem:[#allocation2 + $0x28] sm:$0xff]
    %v52 = vld [vmem:[%s1] sm:$0xff]
    %v53 = vld [vmem:[%s1 + $0x8] sm:$0xff]
    %v54 = vld [vmem:[%s1 + $0x10] sm:$0xff]
    %v55 = vld [vmem:[%s1 + $0x18] sm:$0xff]
    %v56 = vld [vmem:[%s1 + $0x20] sm:$0xff]
    %v57 = vld [vmem:[%s1 + $0x28] sm:$0xff]
    %v58 = vld [vmem:[%s1 + $0x30] sm:$0xff]
    %v59 = vld [vmem:[%s1 + $0x38] sm:$0xff]
    %v60 = vld [vmem:[%s1 + $0x40] sm:$0xff]
    %v61 = vld [vmem:[%s1 + $0x48] sm:$0xff]
    %v62 = vld [vmem:[%s1 + $0x50] sm:$0xff]
    %v63 = vld [vmem:[%s1 + $0x58] sm:$0xff]
    %v64 = vld [vmem:[%s1 + $0x60] sm:$0xff]
    %v65 = vld [vmem:[%s1 + $0x68] sm:$0xff]
    %v66 = vld [vmem:[%s1 + $0x70] sm:$0xff]
    %v67 = vld [vmem:[%s1 + $0x78] sm:$0xff]
    %v68 = vld [vmem:[%s1 + $0x80] sm:$0xff]
    %v69 = vld [vmem:[%s1 + $0x88] sm:$0xff]
    %v70 = vld [vmem:[%s1 + $0x90] sm:$0xff]
    %v71 = vld [vmem:[%s1 + $0x98] sm:$0xff]
    %v72 = vld [vmem:[%s1 + $0xa0] sm:$0xff]
    %v73 = vld [vmem:[%s1 + $0xa8] sm:$0xff]
    %v74 = vld [vmem:[%s1 + $0xb0] sm:$0xff]
    %v75 = vld [vmem:[%s1 + $0xb8] sm:$0xff]
    %v76 = vld [vmem:[%s1 + $0xc0] sm:$0xff]
    %v77 = vld [vmem:[%s1 + $0xc8] sm:$0xff]
    %v78 = vld [vmem:[%s1 + $0xd0] sm:$0xff]
    %v79 = vld [vmem:[%s1 + $0xd8] sm:$0xff]
    %v80 = vld [vmem:[%s1 + $0xe0] sm:$0xff]
    %v81 = vld [vmem:[%s1 + $0xe8] sm:$0xff]
    %v82 = vld [vmem:[%s1 + $0xf0] sm:$0xff]
    %v83 = vld [vmem:[%s1 + $0xf8] sm:$0xff]
    %v84 = vld [vmem:[%s1 + $0x100] sm:$0xff]
    %v85 = vld [vmem:[%s1 + $0x108] sm:$0xff]
    %v86 = vld [vmem:[%s1 + $0x110] sm:$0xff]
    %v87 = vld [vmem:[%s1 + $0x118] sm:$0xff]
    %v88 = vld [vmem:[%s1 + $0x120] sm:$0xff]
    %v89 = vld [vmem:[%s1 + $0x128] sm:$0xff]
    %v90 = vld [vmem:[%s1 + $0x130] sm:$0xff]
    %v91 = vld [vmem:[%s1 + $0x138] sm:$0xff]
    %v92 = vld [vmem:[%s1 + $0x140] sm:$0xff]
    %v93 = vld [vmem:[%s1 + $0x148] sm:$0xff]
    %v94 = vld [vmem:[%s1 + $0x150] sm:$0xff]
    %v95 = vld [vmem:[%s1 + $0x158] sm:$0xff]
    %v96 = vld [vmem:[%s1 + $0x160] sm:$0xff]
    %v97 = vld [vmem:[%s1 + $0x168] sm:$0xff]
    %v98 = vld [vmem:[%s1 + $0x170] sm:$0xff]
    %v99 = vld [vmem:[%s1 + $0x178] sm:$0xff]
    %v100 = vld [vmem:[%s1 + $0x180] sm:$0xff]
    %v101 = vld [vmem:[%s1 + $0x188] sm:$0xff]
    %v102 = vld [vmem:[%s1 + $0x190] sm:$0xff]
    %v103 = vld [vmem:[%s1 + $0x198] sm:$0xff]
    %v104 = vld [vmem:[%s1 + $0x1a0] sm:$0xff]
    %v105 = vld [vmem:[%s1 + $0x1a8] sm:$0xff]
    %v106 = vld [vmem:[%s1 + $0x1b0] sm:$0xff]
    %v107 = vld [vmem:[%s1 + $0x1b8] sm:$0xff]
    %v108 = vld [vmem:[%s1 + $0x1c0] sm:$0xff]
    %v109 = vld [vmem:[%s1 + $0x1c8] sm:$0xff]
    %v110 = vld [vmem:[%s1 + $0x1d0] sm:$0xff]
    %v111 = vld [vmem:[%s1 + $0x1d8] sm:$0xff]
    %v112 = vld [vmem:[%s1 + $0x1e0] sm:$0xff]
    %v113 = vld [vmem:[%s1 + $0x1e8] sm:$0xff]
    %v114 = vld [vmem:[%s1 + $0x1f0] sm:$0xff]
    %v115 = vld [vmem:[%s1 + $0x1f8] sm:$0xff]
    %v116 = vld [vmem:[%s1 + $0x200] sm:$0xff]
    %v117 = vld [vmem:[%s1 + $0x208] sm:$0xff]
    %v118 = vld [vmem:[%s1 + $0x210] sm:$0xff]
    %v119 = vld [vmem:[%s1 + $0x218] sm:$0xff]
    %v120 = vld [vmem:[%s1 + $0x220] sm:$0xff]
    %v121 = vld [vmem:[%s1 + $0x228] sm:$0xff]
    %v122 = vld [vmem:[%s1 + $0x230] sm:$0xff]
    %v123 = vld [vmem:[%s1 + $0x238] sm:$0xff]
    %v124 = vld [vmem:[%s1 + $0x240] sm:$0xff]
    %v125 = vld [vmem:[%s1 + $0x248] sm:$0xff]
    %v126 = vld [vmem:[%s1 + $0x250] sm:$0xff]
    %v127 = vld [vmem:[%s1 + $0x258] sm:$0xff]
    %v128 = vld [vmem:[%s1 + $0x260] sm:$0xff]
    %v129 = vld [vmem:[%s1 + $0x268] sm:$0xff]
    %v130 = vld [vmem:[%s1 + $0x270] sm:$0xff]
    %v131 = vld [vmem:[%s1 + $0x278] sm:$0xff]
    %v132 = vld [vmem:[%s1 + $0x280] sm:$0xff]
    %v133 = vld [vmem:[%s1 + $0x288] sm:$0xff]
    %v134 = vld [vmem:[%s1 + $0x290] sm:$0xff]
    %v135 = vld [vmem:[%s1 + $0x298] sm:$0xff]
    %v136 = vld [vmem:[%s1 + $0x2a0] sm:$0xff]
    %v137 = vld [vmem:[%s1 + $0x2a8] sm:$0xff]
    %v138 = vld [vmem:[%s1 + $0x2b0] sm:$0xff]
    %v139 = vld [vmem:[%s1 + $0x2b8] sm:$0xff]
    %v140 = vld [vmem:[%s1 + $0x2c0] sm:$0xff]
    %v141 = vld [vmem:[%s1 + $0x2c8] sm:$0xff]
    %v142 = vld [vmem:[%s1 + $0x2d0] sm:$0xff]
    %v143 = vld [vmem:[%s1 + $0x2d8] sm:$0xff]
    %v144 = vld [vmem:[%s1 + $0x2e0] sm:$0xff]
    %v145 = vld [vmem:[%s1 + $0x2e8] sm:$0xff]
    %v146 = vld [vmem:[%s1 + $0x2f0] sm:$0xff]
    %v147 = vld [vmem:[%s1 + $0x2f8] sm:$0xff]
    %v148 = vld [vmem:[%s2] sm:$0x1]
    %v149 = vld [vmem:[%s2 + $0x8] sm:$0xff]
    %v150 = vld [vmem:[%s2 + $0x10] sm:$0xff]
    %v151 = vld [vmem:[%s2 + $0x18] sm:$0xff]
    %v152 = vld [vmem:[%s2 + $0x20] sm:$0xff]
    %v153 = vld [vmem:[%s2 + $0x28] sm:$0x1]
    %v154 = vlaneseq
    %v155 = vshrl.u32 %v154, 7
    %v156 = vsub.s32 0, %v155
    %v157 = vrot.slane %v148, %v156
    %158 = vmatprep.subr.mxu0 0.0
    %159 = vmatpush1.msra.mxu0 %v52
    %160 = vmatprep.subr.mxu0 0.0
    %161 = vmatpush1.msra.mxu0 %v53
    %162 = vmatprep.subr.mxu0 0.0
    %163 = vmatpush1.msra.mxu0 %v54
    %164 = vmatprep.subr.mxu0 0.0
    %165 = vmatpush1.msra.mxu0 %v55
    %166 = vmatprep.subr.mxu0 0.0
    %167 = vmatpush1.msra.mxu0 %v56
    %168 = vmatprep.subr.mxu0 0.0
    %169 = vmatpush1.msra.mxu0 %v57
    %170 = vmatprep.subr.mxu0 0.0
    %171 = vmatpush1.msra.mxu0 %v58
    %172 = vmatprep.subr.mxu0 0.0
    %173 = vmatpush1.msra.mxu0 %v59
    %174 = vmatprep.subr.mxu0 0.0
    %175 = vmatpush1.msra.mxu0 %v60
    %176 = vmatprep.subr.mxu0 0.0
    %177 = vmatpush1.msra.mxu0 %v61
    %178 = vmatprep.subr.mxu0 0.0
    %179 = vmatpush1.msra.mxu0 %v62
    %180 = vmatprep.subr.mxu0 0.0
    %181 = vmatpush1.msra.mxu0 %v63
    %182 = vmatprep.subr.mxu0 0.0
    %183 = vmatpush1.msra.mxu0 %v64
    %184 = vmatprep.subr.mxu0 0.0
    %185 = vmatpush1.msra.mxu0 %v65
    %186 = vmatprep.subr.mxu0 0.0
    %187 = vmatpush1.msra.mxu0 %v66
    %188 = vmatprep.subr.mxu0 0.0
    %189 = vmatpush1.msra.mxu0 %v67
    %190 = vmatprep.subr.mxu0 0.0
    %191 = vmatpush1.msra.mxu0 %v68
    %192 = vmatprep.subr.mxu0 0.0
    %193 = vmatpush1.msra.mxu0 %v69
    %194 = vmatprep.subr.mxu0 0.0
    %195 = vmatpush1.msra.mxu0 %v70
    %196 = vmatprep.subr.mxu0 0.0
    %197 = vmatpush1.msra.mxu0 %v71
    %198 = vmatprep.subr.mxu0 0.0
    %199 = vmatpush1.msra.mxu0 %v72
    %200 = vmatprep.subr.mxu0 0.0
    %201 = vmatpush1.msra.mxu0 %v73
    %202 = vmatprep.subr.mxu0 0.0
    %203 = vmatpush1.msra.mxu0 %v74
    %204 = vmatprep.subr.mxu0 0.0
    %205 = vmatpush1.msra.mxu0 %v75
    %206 = vmatprep.subr.mxu0 0.0
    %207 = vmatpush1.msra.mxu0 %v76
    %208 = vmatprep.subr.mxu0 0.0
    %209 = vmatpush1.msra.mxu0 %v77
    %210 = vmatprep.subr.mxu0 0.0
    %211 = vmatpush1.msra.mxu0 %v78
    %212 = vmatprep.subr.mxu0 0.0
    %213 = vmatpush1.msra.mxu0 %v79
    %214 = vmatprep.subr.mxu0 0.0
    %215 = vmatpush1.msra.mxu0 %v80
    %216 = vmatprep.subr.mxu0 0.0
    %217 = vmatpush1.msra.mxu0 %v81
    %218 = vmatprep.subr.mxu0 0.0
    %219 = vmatpush1.msra.mxu0 %v82
    %220 = vmatprep.subr.mxu0 0.0
    %221 = vmatpush1.msra.mxu0 %v83
    %222 = vmatprep.mubr.f32.mxu0 %v47
    %223 = vmatmul.mubr.f32.gmra.mrb[0].mxu0 %v46
    %v224 = vpop.f32.mrb[0].mxu0
    %v225 = vadd.f32 %v157, %v224
    %v226 = vpop.f32.mrb[0].mxu0
    %227 = vdwg.mxu0
    %228 = vmatprep.subr.mxu0 0.0
    %229 = vmatpush1.msra.mxu0 %v84
    %230 = vmatprep.subr.mxu0 0.0
    %231 = vmatpush1.msra.mxu0 %v85
    %232 = vmatprep.subr.mxu0 0.0
    %233 = vmatpush1.msra.mxu0 %v86
    %234 = vmatprep.subr.mxu0 0.0
    %235 = vmatpush1.msra.mxu0 %v87
    %236 = vmatprep.subr.mxu0 0.0
    %237 = vmatpush1.msra.mxu0 %v88
    %238 = vmatprep.subr.mxu0 0.0
    %239 = vmatpush1.msra.mxu0 %v89
    %240 = vmatprep.subr.mxu0 0.0
    %241 = vmatpush1.msra.mxu0 %v90
    %242 = vmatprep.subr.mxu0 0.0
    %243 = vmatpush1.msra.mxu0 %v91
    %244 = vmatprep.subr.mxu0 0.0
    %245 = vmatpush1.msra.mxu0 %v92
    %246 = vmatprep.subr.mxu0 0.0
    %247 = vmatpush1.msra.mxu0 %v93
    %248 = vmatprep.subr.mxu0 0.0
    %249 = vmatpush1.msra.mxu0 %v94
    %250 = vmatprep.subr.mxu0 0.0
    %251 = vmatpush1.msra.mxu0 %v95
    %252 = vmatprep.subr.mxu0 0.0
    %253 = vmatpush1.msra.mxu0 %v96
    %254 = vmatprep.subr.mxu0 0.0
    %255 = vmatpush1.msra.mxu0 %v97
    %256 = vmatprep.subr.mxu0 0.0
    %257 = vmatpush1.msra.mxu0 %v98
    %258 = vmatprep.subr.mxu0 0.0
    %259 = vmatpush1.msra.mxu0 %v99
    %260 = vmatprep.subr.mxu0 0.0
    %261 = vmatpush1.msra.mxu0 %v100
    %262 = vmatprep.subr.mxu0 0.0
    %263 = vmatpush1.msra.mxu0 %v101
    %264 = vmatprep.subr.mxu0 0.0
    %265 = vmatpush1.msra.mxu0 %v102
    %266 = vmatprep.subr.mxu0 0.0
    %267 = vmatpush1.msra.mxu0 %v103
    %268 = vmatprep.subr.mxu0 0.0
    %269 = vmatpush1.msra.mxu0 %v104
    %270 = vmatprep.subr.mxu0 0.0
    %271 = vmatpush1.msra.mxu0 %v105
    %272 = vmatprep.subr.mxu0 0.0
    %273 = vmatpush1.msra.mxu0 %v106
    %274 = vmatprep.subr.mxu0 0.0
    %275 = vmatpush1.msra.mxu0 %v107
    %276 = vmatprep.subr.mxu0 0.0
    %277 = vmatpush1.msra.mxu0 %v108
    %278 = vmatprep.subr.mxu0 0.0
    %279 = vmatpush1.msra.mxu0 %v109
    %280 = vmatprep.subr.mxu0 0.0
    %281 = vmatpush1.msra.mxu0 %v110
    %282 = vmatprep.subr.mxu0 0.0
    %283 = vmatpush1.msra.mxu0 %v111
    %284 = vmatprep.subr.mxu0 0.0
    %285 = vmatpush1.msra.mxu0 %v112
    %286 = vmatprep.subr.mxu0 0.0
    %287 = vmatpush1.msra.mxu0 %v113
    %288 = vmatprep.subr.mxu0 0.0
    %289 = vmatpush1.msra.mxu0 %v114
    %290 = vmatprep.subr.mxu0 0.0
    %291 = vmatpush1.msra.mxu0 %v115
    %292 = vmatprep.mubr.f32.mxu0 %v49
    %293 = vmatmul.mubr.f32.gmra.mrb[0].mxu0 %v48
    %v294 = vpop.f32.mrb[0].mxu0
    %v295 = vadd.f32 %v225, %v294
    %v296 = vpop.f32.mrb[0].mxu0
    %297 = vdwg.mxu0
    %298 = vmatprep.subr.mxu0 0.0
    %299 = vmatpush1.msra.mxu0 %v116
    %300 = vmatprep.subr.mxu0 0.0
    %301 = vmatpush1.msra.mxu0 %v117
    %302 = vmatprep.subr.mxu0 0.0
    %303 = vmatpush1.msra.mxu0 %v118
    %304 = vmatprep.subr.mxu0 0.0
    %305 = vmatpush1.msra.mxu0 %v119
    %306 = vmatprep.subr.mxu0 0.0
    %307 = vmatpush1.msra.mxu0 %v120
    %308 = vmatprep.subr.mxu0 0.0
    %309 = vmatpush1.msra.mxu0 %v121
    %310 = vmatprep.subr.mxu0 0.0
    %311 = vmatpush1.msra.mxu0 %v122
    %312 = vmatprep.subr.mxu0 0.0
    %313 = vmatpush1.msra.mxu0 %v123
    %314 = vmatprep.subr.mxu0 0.0
    %315 = vmatpush1.msra.mxu0 %v124
    %316 = vmatprep.subr.mxu0 0.0
    %317 = vmatpush1.msra.mxu0 %v125
    %318 = vmatprep.subr.mxu0 0.0
    %319 = vmatpush1.msra.mxu0 %v126
    %320 = vmatprep.subr.mxu0 0.0
    %321 = vmatpush1.msra.mxu0 %v127
    %322 = vmatprep.subr.mxu0 0.0
    %323 = vmatpush1.msra.mxu0 %v128
    %324 = vmatprep.subr.mxu0 0.0
    %325 = vmatpush1.msra.mxu0 %v129
    %326 = vmatprep.subr.mxu0 0.0
    %327 = vmatpush1.msra.mxu0 %v130
    %328 = vmatprep.subr.mxu0 0.0
    %329 = vmatpush1.msra.mxu0 %v131
    %330 = vmatprep.subr.mxu0 0.0
    %331 = vmatpush1.msra.mxu0 %v132
    %332 = vmatprep.subr.mxu0 0.0
    %333 = vmatpush1.msra.mxu0 %v133
    %334 = vmatprep.subr.mxu0 0.0
    %335 = vmatpush1.msra.mxu0 %v134
    %336 = vmatprep.subr.mxu0 0.0
    %337 = vmatpush1.msra.mxu0 %v135
    %338 = vmatprep.subr.mxu0 0.0
    %339 = vmatpush1.msra.mxu0 %v136
    %340 = vmatprep.subr.mxu0 0.0
    %341 = vmatpush1.msra.mxu0 %v137
    %342 = vmatprep.subr.mxu0 0.0
    %343 = vmatpush1.msra.mxu0 %v138
    %344 = vmatprep.subr.mxu0 0.0
    %345 = vmatpush1.msra.mxu0 %v139
    %346 = vmatprep.subr.mxu0 0.0
    %347 = vmatpush1.msra.mxu0 %v140
    %348 = vmatprep.subr.mxu0 0.0
    %349 = vmatpush1.msra.mxu0 %v141
    %350 = vmatprep.subr.mxu0 0.0
    %351 = vmatpush1.msra.mxu0 %v142
    %352 = vmatprep.subr.mxu0 0.0
    %353 = vmatpush1.msra.mxu0 %v143
    %354 = vmatprep.subr.mxu0 0.0
    %355 = vmatpush1.msra.mxu0 %v144
    %356 = vmatprep.subr.mxu0 0.0
    %357 = vmatpush1.msra.mxu0 %v145
    %358 = vmatprep.subr.mxu0 0.0
    %359 = vmatpush1.msra.mxu0 %v146
    %360 = vmatprep.subr.mxu0 0.0
    %361 = vmatpush1.msra.mxu0 %v147
    %362 = vmatprep.mubr.f32.mxu0 %v51
    %363 = vmatmul.mubr.f32.gmra.mrb[0].mxu0 %v50
    %v364 = vpop.f32.mrb[0].mxu0
    %v365 = vadd.f32 %v295, %v364
    %v366 = vpop.f32.mrb[0].mxu0
    %367 = vdwg.mxu0
    %v368 = vmax.f32 %v365, 0.0
    %v369 = vlaneseq
    %v370 = vshrl.u32 %v369, 7
    %v371 = vsub.s32 0, %v370
    %v372 = vrot.slane %v153, %v371
    %vm373 = vcmask 261120
    %v375 = vsel %vm373, %v368, 0
    %377 = vmatprep.subr.mxu0 0.0
    %378 = vmatpush1.msra.mxu0 %v149
    %379 = vmatprep.subr.mxu0 0.0
    %380 = vmatpush1.msra.mxu0 %v150
    %381 = vmatprep.subr.mxu0 0.0
    %382 = vmatpush1.msra.mxu0 %v151
    %383 = vmatprep.subr.mxu0 0.0
    %384 = vmatpush1.msra.mxu0 %v152
    %385 = vmatprep.subr.mxu0 0.0
    %386 = vmatpush1.msra.mxu0 0.0
    %387 = vmatprep.subr.mxu0 0.0
    %388 = vmatpush1.msra.mxu0 0.0
    %389 = vmatprep.subr.mxu0 0.0
    %390 = vmatpush1.msra.mxu0 0.0
    %391 = vmatprep.subr.mxu0 0.0
    %392 = vmatpush1.msra.mxu0 0.0
    %393 = vmatprep.subr.mxu0 0.0
    %394 = vmatpush1.msra.mxu0 0.0
    %395 = vmatprep.subr.mxu0 0.0
    %396 = vmatpush1.msra.mxu0 0.0
    %397 = vmatprep.subr.mxu0 0.0
    %398 = vmatpush1.msra.mxu0 0.0
    %399 = vmatprep.subr.mxu0 0.0
    %400 = vmatpush1.msra.mxu0 0.0
    %401 = vmatprep.subr.mxu0 0.0
    %402 = vmatpush1.msra.mxu0 0.0
    %403 = vmatprep.subr.mxu0 0.0
    %404 = vmatpush1.msra.mxu0 0.0
    %405 = vmatprep.subr.mxu0 0.0
    %406 = vmatpush1.msra.mxu0 0.0
    %407 = vmatprep.subr.mxu0 0.0
    %408 = vmatpush1.msra.mxu0 0.0
    %409 = vmatprep.subr.mxu0 0.0
    %410 = vmatpush1.msra.mxu0 0.0
    %411 = vmatprep.subr.mxu0 0.0
    %412 = vmatpush1.msra.mxu0 0.0
    %413 = vmatprep.subr.mxu0 0.0
    %414 = vmatpush1.msra.mxu0 0.0
    %415 = vmatprep.subr.mxu0 0.0
    %416 = vmatpush1.msra.mxu0 0.0
    %417 = vmatprep.subr.mxu0 0.0
    %418 = vmatpush1.msra.mxu0 0.0
    %419 = vmatprep.subr.mxu0 0.0
    %420 = vmatpush1.msra.mxu0 0.0
    %421 = vmatprep.subr.mxu0 0.0
    %422 = vmatpush1.msra.mxu0 0.0
    %423 = vmatprep.subr.mxu0 0.0
    %424 = vmatpush1.msra.mxu0 0.0
    %425 = vmatprep.subr.mxu0 0.0
    %426 = vmatpush1.msra.mxu0 0.0
    %427 = vmatprep.subr.mxu0 0.0
    %428 = vmatpush1.msra.mxu0 0.0
    %429 = vmatprep.subr.mxu0 0.0
    %430 = vmatpush1.msra.mxu0 0.0
    %431 = vmatprep.subr.mxu0 0.0
    %432 = vmatpush1.msra.mxu0 0.0
    %433 = vmatprep.subr.mxu0 0.0
    %434 = vmatpush1.msra.mxu0 0.0
    %435 = vmatprep.subr.mxu0 0.0
    %436 = vmatpush1.msra.mxu0 0.0
    %437 = vmatprep.subr.mxu0 0.0
    %438 = vmatpush1.msra.mxu0 0.0
    %439 = vmatprep.subr.mxu0 0.0
    %440 = vmatpush1.msra.mxu0 0.0
    %441 = vmatprep.mubr.f32.mxu0 0.0
    %442 = vmatmul.mubr.f32.gmra.mrb[0].mxu0 %v375
    %v443 = vpop.f32.mrb[0].mxu0
    %v444 = vadd.f32 %v372, %v443
    %v445 = vpop.f32.mrb[0].mxu0
    %446 = vdwg.mxu0
    %v447 = vld [vmem:[%s3] sm:$0xff]
    %v448 = vld [vmem:[%s3 + $0x8] sm:$0xff]
    %v449 = vld [vmem:[%s3 + $0x10] sm:$0xff]
    %v450 = vld [vmem:[%s3 + $0x18] sm:$0xff]
    %v451 = vld [vmem:[%s3 + $0x20] sm:$0x1]
    %v452 = vlaneseq
    %v453 = vshrl.u32 %v452, 7
    %v454 = vsub.s32 0, %v453
    %v455 = vrot.slane %v451, %v454
    %v457 = vsel %vm373, %v444, 0
    %459 = vmatprep.subr.mxu0 0.0
    %460 = vmatpush1.msra.mxu0 %v447
    %461 = vmatprep.subr.mxu0 0.0
    %462 = vmatpush1.msra.mxu0 %v448
    %463 = vmatprep.subr.mxu0 0.0
    %464 = vmatpush1.msra.mxu0 %v449
    %465 = vmatprep.subr.mxu0 0.0
    %466 = vmatpush1.msra.mxu0 %v450
    %467 = vmatprep.subr.mxu0 0.0
    %468 = vmatpush1.msra.mxu0 0.0
    %469 = vmatprep.subr.mxu0 0.0
    %470 = vmatpush1.msra.mxu0 0.0
    %471 = vmatprep.subr.mxu0 0.0
    %472 = vmatpush1.msra.mxu0 0.0
    %473 = vmatprep.subr.mxu0 0.0
    %474 = vmatpush1.msra.mxu0 0.0
    %475 = vmatprep.subr.mxu0 0.0
    %476 = vmatpush1.msra.mxu0 0.0
    %477 = vmatprep.subr.mxu0 0.0
    %478 = vmatpush1.msra.mxu0 0.0
    %479 = vmatprep.subr.mxu0 0.0
    %480 = vmatpush1.msra.mxu0 0.0
    %481 = vmatprep.subr.mxu0 0.0
    %482 = vmatpush1.msra.mxu0 0.0
    %483 = vmatprep.subr.mxu0 0.0
    %484 = vmatpush1.msra.mxu0 0.0
    %485 = vmatprep.subr.mxu0 0.0
    %486 = vmatpush1.msra.mxu0 0.0
    %487 = vmatprep.subr.mxu0 0.0
    %488 = vmatpush1.msra.mxu0 0.0
    %489 = vmatprep.subr.mxu0 0.0
    %490 = vmatpush1.msra.mxu0 0.0
    %491 = vmatprep.subr.mxu0 0.0
    %492 = vmatpush1.msra.mxu0 0.0
    %493 = vmatprep.subr.mxu0 0.0
    %494 = vmatpush1.msra.mxu0 0.0
    %495 = vmatprep.subr.mxu0 0.0
    %496 = vmatpush1.msra.mxu0 0.0
    %497 = vmatprep.subr.mxu0 0.0
    %498 = vmatpush1.msra.mxu0 0.0
    %499 = vmatprep.subr.mxu0 0.0
    %500 = vmatpush1.msra.mxu0 0.0
    %501 = vmatprep.subr.mxu0 0.0
    %502 = vmatpush1.msra.mxu0 0.0
    %503 = vmatprep.subr.mxu0 0.0
    %504 = vmatpush1.msra.mxu0 0.0
    %505 = vmatprep.subr.mxu0 0.0
    %506 = vmatpush1.msra.mxu0 0.0
    %507 = vmatprep.subr.mxu0 0.0
    %508 = vmatpush1.msra.mxu0 0.0
    %509 = vmatprep.subr.mxu0 0.0
    %510 = vmatpush1.msra.mxu0 0.0
    %511 = vmatprep.subr.mxu0 0.0
    %512 = vmatpush1.msra.mxu0 0.0
    %513 = vmatprep.subr.mxu0 0.0
    %514 = vmatpush1.msra.mxu0 0.0
    %515 = vmatprep.subr.mxu0 0.0
    %516 = vmatpush1.msra.mxu0 0.0
    %517 = vmatprep.subr.mxu0 0.0
    %518 = vmatpush1.msra.mxu0 0.0
    %519 = vmatprep.subr.mxu0 0.0
    %520 = vmatpush1.msra.mxu0 0.0
    %521 = vmatprep.subr.mxu0 0.0
    %522 = vmatpush1.msra.mxu0 0.0
    %523 = vmatprep.mubr.f32.mxu0 0.0
    %524 = vmatmul.mubr.f32.gmra.mrb[0].mxu0 %v457
    %v525 = vpop.f32.mrb[0].mxu0
    %v526 = vadd.f32 %v455, %v525
    %v527 = vpop.f32.mrb[0].mxu0
    %528 = vdwg.mxu0
    %v529 = vmax.f32 %v526, 0.0
    %v530 = vld [vmem:[%s4] sm:$0xff]
    %v531 = vld [vmem:[%s4 + $0x8] sm:$0xff]
    %v532 = vld [vmem:[%s4 + $0x10] sm:$0xff]
    %v533 = vld [vmem:[%s4 + $0x18] sm:$0xff]
    %v534 = vld [vmem:[%s4 + $0x20] sm:$0xff]
    %v535 = vld [vmem:[%s4 + $0x28] sm:$0xff]
    %v536 = vld [vmem:[%s4 + $0x30] sm:$0xff]
    %v537 = vld [vmem:[%s4 + $0x38] sm:$0xff]
    %v538 = vld [vmem:[%s4 + $0x40] sm:$0xff]
    %v539 = vld [vmem:[%s4 + $0x48] sm:$0xff]
    %v540 = vld [vmem:[%s4 + $0x50] sm:$0xff]
    %v541 = vld [vmem:[%s4 + $0x58] sm:$0xff]
    %v542 = vld [vmem:[%s4 + $0x60] sm:$0x1]
    %v543 = vlaneseq
    %v544 = vshrl.u32 %v543, 7
    %v545 = vsub.s32 0, %v544
    %v546 = vrot.slane %v542, %v545
    %vm547 = vcmask 785408
    %v549 = vsel %vm547, %v529, 0
    %551 = vmatprep.subr.mxu0 0.0
    %552 = vmatpush1.msra.mxu0 %v530
    %553 = vmatprep.subr.mxu0 0.0
    %554 = vmatpush1.msra.mxu0 %v531
    %555 = vmatprep.subr.mxu0 0.0
    %556 = vmatpush1.msra.mxu0 %v532
    %557 = vmatprep.subr.mxu0 0.0
    %558 = vmatpush1.msra.mxu0 %v533
    %559 = vmatprep.subr.mxu0 0.0
    %560 = vmatpush1.msra.mxu0 %v534
    %561 = vmatprep.subr.mxu0 0.0
    %562 = vmatpush1.msra.mxu0 %v535
    %563 = vmatprep.subr.mxu0 0.0
    %564 = vmatpush1.msra.mxu0 %v536
    %565 = vmatprep.subr.mxu0 0.0
    %566 = vmatpush1.msra.mxu0 %v537
    %567 = vmatprep.subr.mxu0 0.0
    %568 = vmatpush1.msra.mxu0 %v538
    %569 = vmatprep.subr.mxu0 0.0
    %570 = vmatpush1.msra.mxu0 %v539
    %571 = vmatprep.subr.mxu0 0.0
    %572 = vmatpush1.msra.mxu0 %v540
    %573 = vmatprep.subr.mxu0 0.0
    %574 = vmatpush1.msra.mxu0 %v541
    %575 = vmatprep.subr.mxu0 0.0
    %576 = vmatpush1.msra.mxu0 0.0
    %577 = vmatprep.subr.mxu0 0.0
    %578 = vmatpush1.msra.mxu0 0.0
    %579 = vmatprep.subr.mxu0 0.0
    %580 = vmatpush1.msra.mxu0 0.0
    %581 = vmatprep.subr.mxu0 0.0
    %582 = vmatpush1.msra.mxu0 0.0
    %583 = vmatprep.subr.mxu0 0.0
    %584 = vmatpush1.msra.mxu0 0.0
    %585 = vmatprep.subr.mxu0 0.0
    %586 = vmatpush1.msra.mxu0 0.0
    %587 = vmatprep.subr.mxu0 0.0
    %588 = vmatpush1.msra.mxu0 0.0
    %589 = vmatprep.subr.mxu0 0.0
    %590 = vmatpush1.msra.mxu0 0.0
    %591 = vmatprep.subr.mxu0 0.0
    %592 = vmatpush1.msra.mxu0 0.0
    %593 = vmatprep.subr.mxu0 0.0
    %594 = vmatpush1.msra.mxu0 0.0
    %595 = vmatprep.subr.mxu0 0.0
    %596 = vmatpush1.msra.mxu0 0.0
    %597 = vmatprep.subr.mxu0 0.0
    %598 = vmatpush1.msra.mxu0 0.0
    %599 = vmatprep.subr.mxu0 0.0
    %600 = vmatpush1.msra.mxu0 0.0
    %601 = vmatprep.subr.mxu0 0.0
    %602 = vmatpush1.msra.mxu0 0.0
    %603 = vmatprep.subr.mxu0 0.0
    %604 = vmatpush1.msra.mxu0 0.0
    %605 = vmatprep.subr.mxu0 0.0
    %606 = vmatpush1.msra.mxu0 0.0
    %607 = vmatprep.subr.mxu0 0.0
    %608 = vmatpush1.msra.mxu0 0.0
    %609 = vmatprep.subr.mxu0 0.0
    %610 = vmatpush1.msra.mxu0 0.0
    %611 = vmatprep.subr.mxu0 0.0
    %612 = vmatpush1.msra.mxu0 0.0
    %613 = vmatprep.subr.mxu0 0.0
    %614 = vmatpush1.msra.mxu0 0.0
    %615 = vmatprep.mubr.f32.mxu0 0.0
    %616 = vmatmul.mubr.f32.gmra.mrb[0].mxu0 %v549
    %v617 = vpop.f32.mrb[0].mxu0
    %v618 = vadd.f32 %v546, %v617
    %v619 = vpop.f32.mrb[0].mxu0
    %620 = vdwg.mxu0
    %v621 = vld [vmem:[%s5] sm:$0xff]
    %v622 = vld [vmem:[%s5 + $0x8] sm:$0xff]
    %v623 = vld [vmem:[%s5 + $0x10] sm:$0xff]
    %v624 = vld [vmem:[%s5 + $0x18] sm:$0xff]
    %v625 = vld [vmem:[%s5 + $0x20] sm:$0xff]
    %v626 = vld [vmem:[%s5 + $0x28] sm:$0xff]
    %v627 = vld [vmem:[%s5 + $0x30] sm:$0xff]
    %v628 = vld [vmem:[%s5 + $0x38] sm:$0xff]
    %v629 = vld [vmem:[%s5 + $0x40] sm:$0xff]
    %v630 = vld [vmem:[%s5 + $0x48] sm:$0xff]
    %v631 = vld [vmem:[%s5 + $0x50] sm:$0xff]
    %v632 = vld [vmem:[%s5 + $0x58] sm:$0xff]
    %v633 = vld [vmem:[%s5 + $0x60] sm:$0xff]
    %v634 = vld [vmem:[%s5 + $0x68] sm:$0xff]
    %v635 = vld [vmem:[%s5 + $0x70] sm:$0xff]
    %v636 = vld [vmem:[%s5 + $0x78] sm:$0xff]
    %v637 = vld [vmem:[%s5 + $0x80] sm:$0xff]
    %v638 = vld [vmem:[%s5 + $0x88] sm:$0xff]
    %v639 = vld [vmem:[%s5 + $0x90] sm:$0xff]
    %v640 = vld [vmem:[%s5 + $0x98] sm:$0xff]
    %v641 = vld [vmem:[%s5 + $0xa0] sm:$0xff]
    %v642 = vld [vmem:[%s5 + $0xa8] sm:$0xff]
    %v643 = vld [vmem:[%s5 + $0xb0] sm:$0xff]
    %v644 = vld [vmem:[%s5 + $0xb8] sm:$0xff]
    %s645 = scalar_lea.vmem %s5, 192
    %v646 = vld [vmem:[%s645] ss:$8 sm:$0x3]
    %v648 = vlaneseq
    %v649 = vshrl.u32 %v648, 7
    %v650 = vsub.s32 0, %v649
    %v651 = vrot.slane %v646, %v650
    %v652 = vlaneseq
    %v653 = vshrl.u32 %v652, 7
    %v654 = vsub.s32 1, %v653
    %v655 = vrot.slane %v646, %v654
    %v659 = vsel %vm547, %v618, 0
    %661 = vmatprep.subr.mxu0 %v622
    %662 = vmatpush1.msra.mxu0 %v621
    %663 = vmatprep.subr.mxu0 %v624
    %664 = vmatpush1.msra.mxu0 %v623
    %665 = vmatprep.subr.mxu0 %v626
    %666 = vmatpush1.msra.mxu0 %v625
    %667 = vmatprep.subr.mxu0 %v628
    %668 = vmatpush1.msra.mxu0 %v627
    %669 = vmatprep.subr.mxu0 %v630
    %670 = vmatpush1.msra.mxu0 %v629
    %671 = vmatprep.subr.mxu0 %v632
    %672 = vmatpush1.msra.mxu0 %v631
    %673 = vmatprep.subr.mxu0 %v634
    %674 = vmatpush1.msra.mxu0 %v633
    %675 = vmatprep.subr.mxu0 %v636
    %676 = vmatpush1.msra.mxu0 %v635
    %677 = vmatprep.subr.mxu0 %v638
    %678 = vmatpush1.msra.mxu0 %v637
    %679 = vmatprep.subr.mxu0 %v640
    %680 = vmatpush1.msra.mxu0 %v639
    %681 = vmatprep.subr.mxu0 %v642
    %682 = vmatpush1.msra.mxu0 %v641
    %683 = vmatprep.subr.mxu0 %v644
    %684 = vmatpush1.msra.mxu0 %v643
    %685 = vmatprep.subr.mxu0 0.0
    %686 = vmatpush1.msra.mxu0 0.0
    %687 = vmatprep.subr.mxu0 0.0
    %688 = vmatpush1.msra.mxu0 0.0
    %689 = vmatprep.subr.mxu0 0.0
    %690 = vmatpush1.msra.mxu0 0.0
    %691 = vmatprep.subr.mxu0 0.0
    %692 = vmatpush1.msra.mxu0 0.0
    %693 = vmatprep.subr.mxu0 0.0
    %694 = vmatpush1.msra.mxu0 0.0
    %695 = vmatprep.subr.mxu0 0.0
    %696 = vmatpush1.msra.mxu0 0.0
    %697 = vmatprep.subr.mxu0 0.0
    %698 = vmatpush1.msra.mxu0 0.0
    %699 = vmatprep.subr.mxu0 0.0
    %700 = vmatpush1.msra.mxu0 0.0
    %701 = vmatprep.subr.mxu0 0.0
    %702 = vmatpush1.msra.mxu0 0.0
    %703 = vmatprep.subr.mxu0 0.0
    %704 = vmatpush1.msra.mxu0 0.0
    %705 = vmatprep.subr.mxu0 0.0
    %706 = vmatpush1.msra.mxu0 0.0
    %707 = vmatprep.subr.mxu0 0.0
    %708 = vmatpush1.msra.mxu0 0.0
    %709 = vmatprep.subr.mxu0 0.0
    %710 = vmatpush1.msra.mxu0 0.0
    %711 = vmatprep.subr.mxu0 0.0
    %712 = vmatpush1.msra.mxu0 0.0
    %713 = vmatprep.subr.mxu0 0.0
    %714 = vmatpush1.msra.mxu0 0.0
    %715 = vmatprep.subr.mxu0 0.0
    %716 = vmatpush1.msra.mxu0 0.0
    %717 = vmatprep.subr.mxu0 0.0
    %718 = vmatpush1.msra.mxu0 0.0
    %719 = vmatprep.subr.mxu0 0.0
    %720 = vmatpush1.msra.mxu0 0.0
    %721 = vmatprep.subr.mxu0 0.0
    %722 = vmatpush1.msra.mxu0 0.0
    %723 = vmatprep.subr.mxu0 0.0
    %724 = vmatpush1.msra.mxu0 0.0
    %725 = vmatprep.mubr.f32.mxu0 0.0
    %726 = vmatmul.mubr.f32.gmra.mrb[0].mxu0 %v659
    %v727 = vpop.f32.mrb[0].mxu0
    %v728 = vadd.f32 %v651, %v727
    %v729 = vpop.f32.mrb[0].mxu0
    %v730 = vadd.f32 %v655, %v729
    %731 = vdwg.mxu0
    %v732 = vmax.f32 %v728, 0.0
    %v733 = vmax.f32 %v730, 0.0
    %v734 = vld [vmem:[%s6] sm:$0xff]
    %v735 = vld [vmem:[%s6 + $0x8] sm:$0xff]
    %v736 = vld [vmem:[%s6 + $0x10] sm:$0xff]
    %v737 = vld [vmem:[%s6 + $0x18] sm:$0xff]
    %v738 = vld [vmem:[%s6 + $0x20] sm:$0xff]
    %v739 = vld [vmem:[%s6 + $0x28] sm:$0xff]
    %v740 = vld [vmem:[%s6 + $0x30] sm:$0xff]
    %v741 = vld [vmem:[%s6 + $0x38] sm:$0xff]
    %v742 = vld [vmem:[%s6 + $0x40] sm:$0xff]
    %v743 = vld [vmem:[%s6 + $0x48] sm:$0xff]
    %v744 = vld [vmem:[%s6 + $0x50] sm:$0xff]
    %v745 = vld [vmem:[%s6 + $0x58] sm:$0xff]
    %v746 = vld [vmem:[%s6 + $0x60] sm:$0xff]
    %v747 = vld [vmem:[%s6 + $0x68] sm:$0xff]
    %v748 = vld [vmem:[%s6 + $0x70] sm:$0xff]
    %v749 = vld [vmem:[%s6 + $0x78] sm:$0xff]
    %v750 = vld [vmem:[%s6 + $0x80] sm:$0xff]
    %v751 = vld [vmem:[%s6 + $0x88] sm:$0xff]
    %v752 = vld [vmem:[%s6 + $0x90] sm:$0xff]
    %v753 = vld [vmem:[%s6 + $0x98] sm:$0xff]
    %v754 = vld [vmem:[%s6 + $0xa0] sm:$0xff]
    %v755 = vld [vmem:[%s6 + $0xa8] sm:$0xff]
    %v756 = vld [vmem:[%s6 + $0xb0] sm:$0xff]
    %v757 = vld [vmem:[%s6 + $0xb8] sm:$0xff]
    %v758 = vld [vmem:[%s6 + $0xc0] sm:$0x1]
    %v759 = vlaneseq
    %v760 = vshrl.u32 %v759, 7
    %v761 = vsub.s32 0, %v760
    %v762 = vrot.slane %v758, %v761
    %vm763 = vcmask 523264
    %v765 = vsel %vm763, %v733, 0
    %767 = vmatprep.subr.mxu0 0.0
    %768 = vmatpush1.msra.mxu0 %v734
    %769 = vmatprep.subr.mxu0 0.0
    %770 = vmatpush1.msra.mxu0 %v735
    %771 = vmatprep.subr.mxu0 0.0
    %772 = vmatpush1.msra.mxu0 %v736
    %773 = vmatprep.subr.mxu0 0.0
    %774 = vmatpush1.msra.mxu0 %v737
    %775 = vmatprep.subr.mxu0 0.0
    %776 = vmatpush1.msra.mxu0 %v738
    %777 = vmatprep.subr.mxu0 0.0
    %778 = vmatpush1.msra.mxu0 %v739
    %779 = vmatprep.subr.mxu0 0.0
    %780 = vmatpush1.msra.mxu0 %v740
    %781 = vmatprep.subr.mxu0 0.0
    %782 = vmatpush1.msra.mxu0 %v741
    %783 = vmatprep.subr.mxu0 0.0
    %784 = vmatpush1.msra.mxu0 %v742
    %785 = vmatprep.subr.mxu0 0.0
    %786 = vmatpush1.msra.mxu0 %v743
    %787 = vmatprep.subr.mxu0 0.0
    %788 = vmatpush1.msra.mxu0 %v744
    %789 = vmatprep.subr.mxu0 0.0
    %790 = vmatpush1.msra.mxu0 %v745
    %791 = vmatprep.subr.mxu0 0.0
    %792 = vmatpush1.msra.mxu0 %v746
    %793 = vmatprep.subr.mxu0 0.0
    %794 = vmatpush1.msra.mxu0 %v747
    %795 = vmatprep.subr.mxu0 0.0
    %796 = vmatpush1.msra.mxu0 %v748
    %797 = vmatprep.subr.mxu0 0.0
    %798 = vmatpush1.msra.mxu0 %v749
    %799 = vmatprep.subr.mxu0 0.0
    %800 = vmatpush1.msra.mxu0 %v750
    %801 = vmatprep.subr.mxu0 0.0
    %802 = vmatpush1.msra.mxu0 %v751
    %803 = vmatprep.subr.mxu0 0.0
    %804 = vmatpush1.msra.mxu0 %v752
    %805 = vmatprep.subr.mxu0 0.0
    %806 = vmatpush1.msra.mxu0 %v753
    %807 = vmatprep.subr.mxu0 0.0
    %808 = vmatpush1.msra.mxu0 %v754
    %809 = vmatprep.subr.mxu0 0.0
    %810 = vmatpush1.msra.mxu0 %v755
    %811 = vmatprep.subr.mxu0 0.0
    %812 = vmatpush1.msra.mxu0 %v756
    %813 = vmatprep.subr.mxu0 0.0
    %814 = vmatpush1.msra.mxu0 %v757
    %815 = vmatprep.subr.mxu0 0.0
    %816 = vmatpush1.msra.mxu0 0.0
    %817 = vmatprep.subr.mxu0 0.0
    %818 = vmatpush1.msra.mxu0 0.0
    %819 = vmatprep.subr.mxu0 0.0
    %820 = vmatpush1.msra.mxu0 0.0
    %821 = vmatprep.subr.mxu0 0.0
    %822 = vmatpush1.msra.mxu0 0.0
    %823 = vmatprep.subr.mxu0 0.0
    %824 = vmatpush1.msra.mxu0 0.0
    %825 = vmatprep.subr.mxu0 0.0
    %826 = vmatpush1.msra.mxu0 0.0
    %827 = vmatprep.subr.mxu0 0.0
    %828 = vmatpush1.msra.mxu0 0.0
    %829 = vmatprep.subr.mxu0 0.0
    %830 = vmatpush1.msra.mxu0 0.0
    %831 = vmatprep.mubr.f32.mxu0 %v765
    %832 = vmatmul.mubr.f32.gmra.mrb[0].mxu0 %v732
    %v833 = vpop.f32.mrb[0].mxu0
    %v834 = vadd.f32 %v762, %v833
    %v835 = vpop.f32.mrb[0].mxu0
    %836 = vdwg.mxu0
    %837 = vst [vmem:[#allocation3] sm:$0xff] %v834
    // Predicated region
    $region30: #{tpu_custom_call.1} parent=1 // pred_check
      _
    $region31: #{tpu_custom_call.1} parent=1 // pred_check_branch
      %839 = sbr.rel (0) target = $region33
    $region32: #{tpu_custom_call.1} parent=1 // pred_region
      %s841 = ssub.s32 128, 128
      %842 = vsyncadd [#allocation4], %s841
      %s844 = sshll.u32 [#allocation3], 4
      %s845 = int_to_ptr.vmem [resolvable:$true] %s844
      %847 = dma.vmem_to_hbm [thread:$0]  %s845, 128, %s7, [#allocation4]
    $region33: #{tpu_custom_call.1} parent=1 // pred_fallthru
      _
    // Predicated region
    $region34: #{tpu_custom_call.1} parent=1 // pred_check
      _
    $region35: #{tpu_custom_call.1} parent=1 // pred_check_branch
      %849 = sbr.rel (0) target = $region37
    $region36: #{tpu_custom_call.1} parent=1 // pred_region
      %850 = dma.done [#allocation4], 128
    $region37: #{tpu_custom_call.1} parent=1 // pred_fallthru
      _
    %851 = vsyncpa [#allocation4], 1

</llo_original>
